<compile_context>
chip_gen: v6e
topology: v6e:2x2x1
jax: 0.10.0
libtpu: 0.0.40
codegen_flags: <defaults>
</compile_context>

<pallas_src>
import jax
import jax.numpy as jnp
from jax.experimental import pallas as pl
from jax.experimental.pallas import tpu as pltpu

LN_EPS = 1e-5  # torch.nn.LayerNorm default
VMEM_LIMIT_BYTES = 64 * 1024 * 1024


def _round_up(x, m):
    return ((x + m - 1) // m) * m


def _masklm_mlp_kernel(x_ref, w1_ref, b1_ref, gamma_ref, beta_ref,
                       w2_ref, b2_ref, o_ref, hn_ref):
    # x_ref:   (tm, num_inputs)  bf16 gathered-token row tile
    # w1_ref:  (num_inputs, H)   bf16 (grid-invariant)
    # b1/gamma/beta: (1, H)      f32  (grid-invariant)
    # w2_ref:  (H, tn)           bf16 vocab tile
    # b2_ref:  (1, tn)           f32  vocab tile
    # o_ref:   (tm, tn)          logits tile (f32)
    # hn_ref:  (tm, H)           bf16 VMEM scratch, carried across the j axis
    j = pl.program_id(1)

    @pl.when(j == 0)
    def _():
        # Linear 1 (MXU, bf16 x bf16 -> f32 accumulate) + bias + ReLU
        h = jnp.dot(x_ref[...], w1_ref[...],
                    preferred_element_type=jnp.float32) + b1_ref[...]
        h = jnp.maximum(h, 0.0)
        # LayerNorm over the hidden dim in f32 (biased variance, torch)
        mean = jnp.mean(h, axis=-1, keepdims=True)
        centered = h - mean
        var = jnp.mean(centered * centered, axis=-1, keepdims=True)
        hn = centered * jax.lax.rsqrt(var + LN_EPS)
        hn = hn * gamma_ref[...] + beta_ref[...]
        hn_ref[...] = hn.astype(hn_ref.dtype)

    # Linear 2 (MXU): (tm, H) @ (H, tn) vocab tile + bias
    y = jnp.dot(hn_ref[...], w2_ref[...],
                preferred_element_type=jnp.float32) + b2_ref[...]
    o_ref[...] = y.astype(o_ref.dtype)


def _pick_vocab_tile(tn, V, H, num_inputs, tm_eff):
    """Largest multiple-of-128 vocab tile <= tn that fits the VMEM budget."""
    tn_eff = min(tn, _round_up(V, 128))
    tn_eff = _round_up(tn_eff, 128)

    # Resident (grid-invariant) footprint: x tile, W1, b1/gamma/beta, hn
    # (BlockSpec double-buffers inputs; count x/W1/params twice to be safe.)
    resident = 2 * (tm_eff * num_inputs * 2 + num_inputs * H * 2 + 3 * H * 4)
    resident += tm_eff * H * 2  # hn scratch (single buffer)

    def step_bytes(t):
        # double-buffered W2 tile (bf16) + b2 tile (f32) + output tile (f32)
        return 2 * (H * t * 2 + t * 4 + tm_eff * t * 4)

    budget = VMEM_LIMIT_BYTES // 2  # leave headroom for compiler scratch
    while tn_eff > 128 and resident + step_bytes(tn_eff) > budget:
        tn_eff -= 128
    return tn_eff


def masklm_mlp(masked_x, w1, b1, gamma, beta, w2, b2, *,
               tm=128, tn=1024, out_dtype=jnp.float32):
    """Run the MaskLM MLP head on gathered tokens of shape (M, num_inputs)."""
    M, num_inputs = masked_x.shape
    H = w1.shape[1]
    V = w2.shape[1]

    # Effective tiles: row tile a multiple of 8, vocab tile a multiple of 128.
    tm_eff = min(tm, _round_up(max(M, 1), 8))
    M_pad = _round_up(M, tm_eff)
    tn_eff = _pick_vocab_tile(tn, V, H, num_inputs, tm_eff)
    V_pad = _round_up(V, tn_eff)

    # bf16 MXU operands (zero-padded); bias / LN params stay f32.
    x_p = jnp.zeros((M_pad, num_inputs), jnp.bfloat16)
    x_p = x_p.at[:M].set(masked_x.astype(jnp.bfloat16))
    w1_b = w1.astype(jnp.bfloat16)
    w2_p = jnp.zeros((H, V_pad), jnp.bfloat16)
    w2_p = w2_p.at[:, :V].set(w2.astype(jnp.bfloat16))
    b2_p = jnp.zeros((1, V_pad), jnp.float32)
    b2_p = b2_p.at[:, :V].set(b2.astype(jnp.float32).reshape(1, V))
    b1_f = b1.astype(jnp.float32).reshape(1, H)
    gamma_f = gamma.astype(jnp.float32).reshape(1, H)
    beta_f = beta.astype(jnp.float32).reshape(1, H)

    grid = (M_pad // tm_eff, V_pad // tn_eff)

    out = pl.pallas_call(
        _masklm_mlp_kernel,
        out_shape=jax.ShapeDtypeStruct((M_pad, V_pad), out_dtype),
        grid_spec=pltpu.PrefetchScalarGridSpec(
            num_scalar_prefetch=0,
            grid=grid,
            in_specs=[
                pl.BlockSpec((tm_eff, num_inputs), lambda i, j: (i, 0)),  # x
                pl.BlockSpec((num_inputs, H), lambda i, j: (0, 0)),       # W1
                pl.BlockSpec((1, H), lambda i, j: (0, 0)),                # b1
                pl.BlockSpec((1, H), lambda i, j: (0, 0)),                # gamma
                pl.BlockSpec((1, H), lambda i, j: (0, 0)),                # beta
                pl.BlockSpec((H, tn_eff), lambda i, j: (0, j)),           # W2 tile
                pl.BlockSpec((1, tn_eff), lambda i, j: (0, j)),           # b2 tile
            ],
            out_specs=pl.BlockSpec((tm_eff, tn_eff), lambda i, j: (i, j)),
            scratch_shapes=[pltpu.VMEM((tm_eff, H), jnp.bfloat16)],
        ),
        compiler_params=pltpu.CompilerParams(
            dimension_semantics=("parallel", "arbitrary"),
            vmem_limit_bytes=VMEM_LIMIT_BYTES,
        ),
    )(x_p, w1_b, b1_f, gamma_f, beta_f, w2_p, b2_p)

    return out[:M, :V]


def masklm_forward(X, pred_positions, params):
    """Full MaskLM.forward: gather positions (glue) + Pallas MLP head."""
    batch_size = X.shape[0]
    num_pred_positions = pred_positions.shape[1]

    # torch: batch_idx = repeat_interleave(arange(B), P); masked_X = X[batch_idx, pos]
    flat_pos = pred_positions.reshape(-1)
    batch_idx = jnp.repeat(jnp.arange(batch_size), num_pred_positions)
    masked_X = X[batch_idx, flat_pos]                      # (B*P, num_inputs)

    logits_flat = masklm_mlp(
        masked_X,
        params["w1"], params["b1"],
        params["gamma"], params["beta"],
        params["w2"], params["b2"],
    )
    V = params["w2"].shape[1]
    return logits_flat.reshape(batch_size, num_pred_positions, V)


def init_params(key, num_inputs, num_hiddens, vocab_size):
    """Deterministic synthetic parameters (shapes from MaskLM.__init__)."""
    k1, k2 = jax.random.split(key)
    scale1 = 1.0 / jnp.sqrt(num_inputs)
    scale2 = 1.0 / jnp.sqrt(num_hiddens)
    return {
        "w1": jax.random.normal(k1, (num_inputs, num_hiddens), jnp.float32) * scale1,
        "b1": jnp.zeros((1, num_hiddens), jnp.float32),
        "gamma": jnp.ones((1, num_hiddens), jnp.float32),
        "beta": jnp.zeros((1, num_hiddens), jnp.float32),
        "w2": jax.random.normal(k2, (num_hiddens, vocab_size), jnp.float32) * scale2,
        "b2": jnp.zeros((1, vocab_size), jnp.float32),
    }


def _reference(X, pred_positions, params):
    """Pure-JAX reference mirroring the kernel's bf16-matmul / f32-LN math."""
    B, P = pred_positions.shape
    batch_idx = jnp.repeat(jnp.arange(B), P)
    mx = X[batch_idx, pred_positions.reshape(-1)]
    h = jnp.dot(mx.astype(jnp.bfloat16), params["w1"].astype(jnp.bfloat16),
                preferred_element_type=jnp.float32) + params["b1"]
    h = jnp.maximum(h, 0.0)
    mean = jnp.mean(h, axis=-1, keepdims=True)
    centered = h - mean
    var = jnp.mean(centered * centered, axis=-1, keepdims=True)
    hn = centered * jax.lax.rsqrt(var + LN_EPS)
    hn = hn * params["gamma"] + params["beta"]
    y = jnp.dot(hn.astype(jnp.bfloat16), params["w2"].astype(jnp.bfloat16),
                preferred_element_type=jnp.float32) + params["b2"]
    return y.reshape(B, P, -1)


if __name__ == "__main__":
    # Small shapes consistent with MaskLM's forward.
    batch, seq_len = 2, 16
    num_inputs, num_hiddens, vocab_size = 32, 32, 128
    num_pred = 4

    key = jax.random.PRNGKey(0)
    kx, kp, kparams = jax.random.split(key, 3)

    X = jax.random.normal(kx, (batch, seq_len, num_inputs), jnp.float32)
    pred_positions = jax.random.randint(kp, (batch, num_pred), 0, seq_len,
                                        dtype=jnp.int32)
    params = init_params(kparams, num_inputs, num_hiddens, vocab_size)

    out = jax.jit(masklm_forward)(X, pred_positions, params)
    out = jax.block_until_ready(out)

    ref = _reference(X, pred_positions, params)
    assert out.shape == (batch, num_pred, vocab_size)
    assert jnp.allclose(out, ref, atol=2e-2, rtol=2e-2), (
        float(jnp.max(jnp.abs(out - ref))))

    print("KERNEL_OK")
</pallas_src>

<mosaic_0001>
module attributes {stable_mosaic.version = 11 : i64} {
  func.func @_masklm_mlp_kernel(%arg0: i32, %arg1: i32, %arg2: memref<8x32xbf16, #tpu.memory_space<vmem>>, %arg3: memref<32x32xbf16, #tpu.memory_space<vmem>>, %arg4: memref<1x32xf32, #tpu.memory_space<vmem>>, %arg5: memref<1x32xf32, #tpu.memory_space<vmem>>, %arg6: memref<1x32xf32, #tpu.memory_space<vmem>>, %arg7: memref<32x128xbf16, #tpu.memory_space<vmem>>, %arg8: memref<1x128xf32, #tpu.memory_space<vmem>>, %arg9: memref<8x128xf32, #tpu.memory_space<vmem>>, %arg10: memref<8x32xbf16, #tpu.memory_space<vmem>>) attributes {dimension_semantics = [#tpu.dimension_semantics<parallel>, #tpu.dimension_semantics<arbitrary>], iteration_bounds = array<i64: 1, 1>, scalar_prefetch = 0 : i64, scratch_operands = 1 : i64, tpu.core_type = #tpu.core_type<tc>, window_params = [{transform_indices = @transform_0, window_bounds = array<i64: 8, 32>}, {pipeline_mode = #tpu.pipeline_mode<synchronous>, transform_indices = @transform_1, window_bounds = array<i64: 32, 32>}, {pipeline_mode = #tpu.pipeline_mode<synchronous>, transform_indices = @transform_2, window_bounds = array<i64: 1, 32>}, {pipeline_mode = #tpu.pipeline_mode<synchronous>, transform_indices = @transform_3, window_bounds = array<i64: 1, 32>}, {pipeline_mode = #tpu.pipeline_mode<synchronous>, transform_indices = @transform_4, window_bounds = array<i64: 1, 32>}, {transform_indices = @transform_5, window_bounds = array<i64: 32, 128>}, {transform_indices = @transform_6, window_bounds = array<i64: 1, 128>}, {transform_indices = @transform_7, window_bounds = array<i64: 8, 128>}]} {
    %c0_i32 = arith.constant 0 : i32
    %0 = arith.cmpi eq, %arg1, %c0_i32 : i32
    %1 = arith.extui %0 : i1 to i32
    %c0_i32_0 = arith.constant 0 : i32
    %2 = arith.cmpi ne, %1, %c0_i32_0 : i32
    scf.if %2 {
      %c0_8 = arith.constant 0 : index
      %c0_9 = arith.constant 0 : index
      %10 = vector.load %arg2[%c0_8, %c0_9] : memref<8x32xbf16, #tpu.memory_space<vmem>>, vector<8x32xbf16>
      %c0_10 = arith.constant 0 : index
      %c0_11 = arith.constant 0 : index
      %11 = vector.load %arg3[%c0_10, %c0_11] : memref<32x32xbf16, #tpu.memory_space<vmem>>, vector<32x32xbf16>
      %cst_12 = arith.constant dense<0.000000e+00> : vector<8x32xf32>
      %12 = tpu.matmul %10, %11, %cst_12 {dimension_numbers = #tpu.dot_dimension_numbers<[1], [0], [0], [1], [0, 0, 1, 1], [], []>} : vector<8x32xbf16>, vector<32x32xbf16>, vector<8x32xf32> -> vector<8x32xf32>
      %c0_13 = arith.constant 0 : index
      %c0_14 = arith.constant 0 : index
      %13 = vector.load %arg4[%c0_13, %c0_14] : memref<1x32xf32, #tpu.memory_space<vmem>>, vector<1x32xf32>
      %14 = vector.broadcast %13 : vector<1x32xf32> to vector<8x32xf32>
      %15 = arith.addf %12, %14 : vector<8x32xf32>
      %cst_15 = arith.constant 0.000000e+00 : f32
      %16 = vector.broadcast %cst_15 : f32 to vector<8x32xf32>
      %17 = arith.maximumf %15, %16 : vector<8x32xf32>
      %cst_16 = arith.constant dense<0.000000e+00> : vector<8xf32>
      %18 = vector.multi_reduction <add>, %17, %cst_16 [1] : vector<8x32xf32> to vector<8xf32>
      %19 = vector.shape_cast %18 : vector<8xf32> to vector<8x1xf32>
      %cst_17 = arith.constant 3.200000e+01 : f32
      %20 = vector.broadcast %cst_17 : f32 to vector<8x1xf32>
      %21 = arith.divf %19, %20 : vector<8x1xf32>
      %22 = vector.broadcast %21 : vector<8x1xf32> to vector<8x32xf32>
      %23 = arith.subf %17, %22 : vector<8x32xf32>
      %24 = arith.mulf %23, %23 : vector<8x32xf32>
      %cst_18 = arith.constant dense<0.000000e+00> : vector<8xf32>
      %25 = vector.multi_reduction <add>, %24, %cst_18 [1] : vector<8x32xf32> to vector<8xf32>
      %26 = vector.shape_cast %25 : vector<8xf32> to vector<8x1xf32>
      %cst_19 = arith.constant 3.200000e+01 : f32
      %27 = vector.broadcast %cst_19 : f32 to vector<8x1xf32>
      %28 = arith.divf %26, %27 : vector<8x1xf32>
      %cst_20 = arith.constant 9.99999974E-6 : f32
      %29 = vector.broadcast %cst_20 : f32 to vector<8x1xf32>
      %30 = arith.addf %28, %29 : vector<8x1xf32>
      %31 = math.rsqrt %30 : vector<8x1xf32>
      %32 = vector.broadcast %31 : vector<8x1xf32> to vector<8x32xf32>
      %33 = arith.mulf %23, %32 : vector<8x32xf32>
      %c0_21 = arith.constant 0 : index
      %c0_22 = arith.constant 0 : index
      %34 = vector.load %arg5[%c0_21, %c0_22] : memref<1x32xf32, #tpu.memory_space<vmem>>, vector<1x32xf32>
      %35 = vector.broadcast %34 : vector<1x32xf32> to vector<8x32xf32>
      %36 = arith.mulf %33, %35 : vector<8x32xf32>
      %c0_23 = arith.constant 0 : index
      %c0_24 = arith.constant 0 : index
      %37 = vector.load %arg6[%c0_23, %c0_24] : memref<1x32xf32, #tpu.memory_space<vmem>>, vector<1x32xf32>
      %38 = vector.broadcast %37 : vector<1x32xf32> to vector<8x32xf32>
      %39 = arith.addf %36, %38 : vector<8x32xf32>
      %40 = arith.truncf %39 : vector<8x32xf32> to vector<8x32xbf16>
      %c0_25 = arith.constant 0 : index
      %c0_26 = arith.constant 0 : index
      %41 = vector.load %arg10[%c0_25, %c0_26] : memref<8x32xbf16, #tpu.memory_space<vmem>>, vector<8x32xbf16>
      tpu.vector_store %arg10[%c0_25, %c0_26], %40 {strides = array<i32>} : memref<8x32xbf16, #tpu.memory_space<vmem>>, vector<8x32xbf16>,
    } else {
    }
    %c0 = arith.constant 0 : index
    %c0_1 = arith.constant 0 : index
    %3 = vector.load %arg10[%c0, %c0_1] : memref<8x32xbf16, #tpu.memory_space<vmem>>, vector<8x32xbf16>
    %c0_2 = arith.constant 0 : index
    %c0_3 = arith.constant 0 : index
    %4 = vector.load %arg7[%c0_2, %c0_3] : memref<32x128xbf16, #tpu.memory_space<vmem>>, vector<32x128xbf16>
    %cst = arith.constant dense<0.000000e+00> : vector<8x128xf32>
    %5 = tpu.matmul %3, %4, %cst {dimension_numbers = #tpu.dot_dimension_numbers<[1], [0], [0], [1], [0, 0, 1, 1], [], []>} : vector<8x32xbf16>, vector<32x128xbf16>, vector<8x128xf32> -> vector<8x128xf32>
    %c0_4 = arith.constant 0 : index
    %c0_5 = arith.constant 0 : index
    %6 = vector.load %arg8[%c0_4, %c0_5] : memref<1x128xf32, #tpu.memory_space<vmem>>, vector<1x128xf32>
    %7 = vector.broadcast %6 : vector<1x128xf32> to vector<8x128xf32>
    %8 = arith.addf %5, %7 : vector<8x128xf32>
    %c0_6 = arith.constant 0 : index
    %c0_7 = arith.constant 0 : index
    %9 = vector.load %arg9[%c0_6, %c0_7] : memref<8x128xf32, #tpu.memory_space<vmem>>, vector<8x128xf32>
    tpu.vector_store %arg9[%c0_6, %c0_7], %8 {strides = array<i32>} : memref<8x128xf32, #tpu.memory_space<vmem>>, vector<8x128xf32>,
    return
  }
  func.func @transform_0(%arg0: i32, %arg1: i32) -> (i32, i32) {
    %c0_i32 = arith.constant 0 : i32
    %c0_i32_0 = arith.constant 0 : i32
    return %arg0, %c0_i32 : i32, i32
  }
  func.func @transform_1(%arg0: i32, %arg1: i32) -> (i32, i32) {
    %c0_i32 = arith.constant 0 : i32
    %c0_i32_0 = arith.constant 0 : i32
    %c0_i32_1 = arith.constant 0 : i32
    return %c0_i32, %c0_i32_0 : i32, i32
  }
  func.func @transform_2(%arg0: i32, %arg1: i32) -> (i32, i32) {
    %c0_i32 = arith.constant 0 : i32
    %c0_i32_0 = arith.constant 0 : i32
    %c0_i32_1 = arith.constant 0 : i32
    return %c0_i32, %c0_i32_0 : i32, i32
  }
  func.func @transform_3(%arg0: i32, %arg1: i32) -> (i32, i32) {
    %c0_i32 = arith.constant 0 : i32
    %c0_i32_0 = arith.constant 0 : i32
    %c0_i32_1 = arith.constant 0 : i32
    return %c0_i32, %c0_i32_0 : i32, i32
  }
  func.func @transform_4(%arg0: i32, %arg1: i32) -> (i32, i32) {
    %c0_i32 = arith.constant 0 : i32
    %c0_i32_0 = arith.constant 0 : i32
    %c0_i32_1 = arith.constant 0 : i32
    return %c0_i32, %c0_i32_0 : i32, i32
  }
  func.func @transform_5(%arg0: i32, %arg1: i32) -> (i32, i32) {
    %c0_i32 = arith.constant 0 : i32
    %c0_i32_0 = arith.constant 0 : i32
    return %c0_i32, %arg1 : i32, i32
  }
  func.func @transform_6(%arg0: i32, %arg1: i32) -> (i32, i32) {
    %c0_i32 = arith.constant 0 : i32
    %c0_i32_0 = arith.constant 0 : i32
    return %c0_i32, %arg1 : i32, i32
  }
  func.func @transform_7(%arg0: i32, %arg1: i32) -> (i32, i32) {
    %c0_i32 = arith.constant 0 : i32
    return %arg0, %arg1 : i32, i32
  }
}

</mosaic_0001>

<llo_original>
// kernel: masklm_forward.1
$region0: #{masklm_forward.1}
  #allocation0 [shape = 'u32[]', space=smem, size = 0x4, offset = 0x4, fixed_abs, tag = 'smem constant byte address 0x4 - core index']
  #allocation1 [shape = 'u32[144,128]{1,0:T(1,128)}', space=vmem, size = 0x12000, scoped, tag = 'internal scratch']
  #allocation2 [shape = 'bf16[8,32]{1,0:T(8,128)(2,1)}', space=vmem, size = 0x800, scoped, tag = 'scratch operand']
  %s0 = inlined_call_operand.vmem [shape: bf16[8,32], index: 0, kind: input, shape index: {}]
  %s1 = inlined_call_operand.vmem [shape: bf16[32,32], index: 1, kind: input, shape index: {}]
  %s2 = inlined_call_operand.vmem [shape: f32[1,32], index: 2, kind: input, shape index: {}]
  %s3 = inlined_call_operand.vmem [shape: f32[1,32], index: 3, kind: input, shape index: {}]
  %s4 = inlined_call_operand.vmem [shape: f32[1,32], index: 4, kind: input, shape index: {}]
  %s5 = inlined_call_operand.vmem [shape: bf16[32,128], index: 5, kind: input, shape index: {}]
  %s6 = inlined_call_operand.vmem [shape: f32[1,128], index: 6, kind: input, shape index: {}]
  %s7 = inlined_call_operand.hbm [shape: f32[8,128], index: 7, kind: output, shape index: {}]
  %s8 = sld [smem:[#allocation0]]
  $region42: #{masklm_forward.1} parent=0
    _
  %s10 = ssub.s32 1, %s8
  %s11 = scalar_select 0, %s10, %s8
  $region1: #{masklm_forward.1} parent=0
    #allocation3 [shape = 'u8[4096]{0}', space=vmem, size = 0x1000, scoped, tag = 'output window, operand 0, single buffered']
    #allocation4 [shape = 's32[1]{0}', space=sflag, size = 0x4, scoped, tag = 'scoped memory for masklm_forward.1']
    %12 = vsyncpa [#allocation4], 0
    // Predicated region
    $region2: #{masklm_forward.1} parent=1 // pred_check
      _
    $region3: #{masklm_forward.1} parent=1 // pred_check_branch
      %14 = sbr.rel (0) target = $region5
    $region4: #{masklm_forward.1} parent=1 // pred_region
      _
    $region5: #{masklm_forward.1} parent=1 // pred_fallthru
      _
    // Predicated region
    $region6: #{masklm_forward.1} parent=1 // pred_check
      _
    $region7: #{masklm_forward.1} parent=1 // pred_check_branch
      %16 = sbr.rel (0) target = $region9
    $region8: #{masklm_forward.1} parent=1 // pred_region
      _
    $region9: #{masklm_forward.1} parent=1 // pred_fallthru
      _
    // Predicated region
    $region10: #{masklm_forward.1} parent=1 // pred_check
      _
    $region11: #{masklm_forward.1} parent=1 // pred_check_branch
      %18 = sbr.rel (0) target = $region13
    $region12: #{masklm_forward.1} parent=1 // pred_region
      _
    $region13: #{masklm_forward.1} parent=1 // pred_fallthru
      _
    // Predicated region
    $region14: #{masklm_forward.1} parent=1 // pred_check
      _
    $region15: #{masklm_forward.1} parent=1 // pred_check_branch
      %20 = sbr.rel (0) target = $region17
    $region16: #{masklm_forward.1} parent=1 // pred_region
      _
    $region17: #{masklm_forward.1} parent=1 // pred_fallthru
      _
    // Predicated region
    $region18: #{masklm_forward.1} parent=1 // pred_check
      _
    $region19: #{masklm_forward.1} parent=1 // pred_check_branch
      %22 = sbr.rel (0) target = $region21
    $region20: #{masklm_forward.1} parent=1 // pred_region
      _
    $region21: #{masklm_forward.1} parent=1 // pred_fallthru
      _
    // Predicated region
    $region22: #{masklm_forward.1} parent=1 // pred_check
      _
    $region23: #{masklm_forward.1} parent=1 // pred_check_branch
      %24 = sbr.rel (0) target = $region25
    $region24: #{masklm_forward.1} parent=1 // pred_region
      _
    $region25: #{masklm_forward.1} parent=1 // pred_fallthru
      _
    // Predicated region
    $region26: #{masklm_forward.1} parent=1 // pred_check
      _
    $region27: #{masklm_forward.1} parent=1 // pred_check_branch
      %26 = sbr.rel (0) target = $region29
    $region28: #{masklm_forward.1} parent=1 // pred_region
      _
    $region29: #{masklm_forward.1} parent=1 // pred_fallthru
      _
    %p28 = scmp.eq.s32.totalorder 0, 0
    // Predicated region
    $region30: #{masklm_forward.1} parent=1 // pred_check
      %p29 = pneg %p28
    $region31: #{masklm_forward.1} parent=1 // pred_check_branch
      %31 = sbr.rel (%p29) target = $region33
    $region32: #{masklm_forward.1} parent=1 // pred_region
      %v32 = vld [vmem:[%s0] sm:$0xf]
      %v33 = vld [vmem:[%s1] sm:$0xf]
      %v34 = vld [vmem:[%s1 + $0x4] sm:$0xf]
      %v35 = vld [vmem:[%s1 + $0x8] sm:$0xf]
      %v36 = vld [vmem:[%s1 + $0xc] sm:$0xf]
      %v37 = vld [vmem:[%s2] sm:$0x1]
      %v39 = vlaneseq
      %v40 = vshrl.u32 %v39, 7
      %v41 = vsub.s32 0, %v40
      %v42 = vrot.slane %v37, %v41
      %v48 = vunpack.c.l.b16 %v33
      %v49 = vunpack.c.l.b16 %v34
      %v50 = vunpack.c.l.b16 %v35
      %v51 = vunpack.c.l.b16 %v36
      %v52 = vpack.c.b16 %v49, %v48
      %v53 = vpack.c.b16 %v51, %v50
      %vm56 = vcmask 261120
      %v58 = vsel %vm56, %v32, 0
      %60 = vmatprep.subr.bf16.mxu0 0
      %61 = vmatpush1.bf16.msra.mxu0 0
      %62 = vmatprep.subr.bf16.mxu0 0
      %63 = vmatpush1.bf16.msra.mxu0 0
      %64 = vmatprep.subr.bf16.mxu0 0
      %65 = vmatpush1.bf16.msra.mxu0 0
      %66 = vmatprep.subr.bf16.mxu0 0
      %67 = vmatpush1.bf16.msra.mxu0 0
      %68 = vmatprep.subr.bf16.mxu0 0
      %69 = vmatpush1.bf16.msra.mxu0 0
      %70 = vmatprep.subr.bf16.mxu0 0
      %71 = vmatpush1.bf16.msra.mxu0 0
      %72 = vmatprep.subr.bf16.mxu0 0
      %73 = vmatpush1.bf16.msra.mxu0 %v53
      %74 = vmatprep.subr.bf16.mxu0 0
      %75 = vmatpush1.bf16.msra.mxu0 %v52
      %76 = vmatprep.subr.bf16.mxu0 0
      %77 = vmatpush2.bf16.msra.mxu0 0
      %78 = vmatprep.subr.bf16.mxu0 0
      %79 = vmatpush2.bf16.msra.mxu0 0
      %80 = vmatprep.subr.bf16.mxu0 0
      %81 = vmatpush2.bf16.msra.mxu0 0
      %82 = vmatprep.subr.bf16.mxu0 0
      %83 = vmatpush2.bf16.msra.mxu0 0
      %84 = vmatprep.subr.bf16.mxu0 0
      %85 = vmatpush2.bf16.msra.mxu0 0
      %86 = vmatprep.subr.bf16.mxu0 0
      %87 = vmatpush2.bf16.msra.mxu0 0
      %88 = vmatprep.subr.bf16.mxu0 0
      %89 = vmatpush2.bf16.msra.mxu0 0
      %90 = vmatprep.subr.bf16.mxu0 0
      %91 = vmatpush2.bf16.msra.mxu0 0
      %92 = vmatprep.mubr.bf16.mxu0 0
      %93 = vmatmul.mubr.bf16.gmra.mxu0 %v58
      %v94 = vpop.f32.mrf.mxu0
      %v95 = vadd.f32 %v42, %v94
      %v96 = vpop.f32.mrf.mxu0
      %v97 = vpop.f32.mrf.mxu0
      %v98 = vpop.f32.mrf.mxu0
      %99 = vdwg.mxu0
      %v100 = vmax.f32 %v95, 0.0
      %v101 = vsel %vm56, %v100, 0.0
      %102 = vadd.xlane.f32.xlu0 %v101
      %v103 = vpop.xlane.xlu0 %102
      %v104 = vrcp.pop 32.0
      %v105 = vmul.f32 %v103, %v104
      %v106 = vsub.f32 %v100, %v105
      %v107 = vmul.f32 %v106, %v106
      %v108 = vsel %vm56, %v107, 0.0
      %109 = vadd.xlane.f32.xlu0 %v108
      %v110 = vpop.xlane.xlu0 %109
      %v111 = vmul.f32 %v110, %v104
      %v112 = vadd.f32 %v111, 1e-05
      %v113 = vrsqrt.pop %v112
      %v114 = vmul.f32 %v106, %v113
      %v115 = vld [vmem:[%s3] sm:$0x1]
      %v117 = vlaneseq
      %v118 = vshrl.u32 %v117, 7
      %v119 = vsub.s32 0, %v118
      %v120 = vrot.slane %v115, %v119
      %v122 = vmul.f32 %v114, %v120
      %v123 = vld [vmem:[%s4] sm:$0x1]
      %v125 = vlaneseq
      %v126 = vshrl.u32 %v125, 7
      %v127 = vsub.s32 0, %v126
      %v128 = vrot.slane %v123, %v127
      %v130 = vadd.f32 %v122, %v128
      %v131 = vpack.c.bf16 %v130, %v130
      %vm132 = vcmask 257024
      %133 = vst.msk [vmem:[#allocation2] sm:$0xf] %vm132, %v131
    $region33: #{masklm_forward.1} parent=1 // pred_fallthru
      _
    %v134 = vld [vmem:[#allocation2] sm:$0xf]
    %v135 = vld [vmem:[%s5] sm:$0xf]
    %v136 = vld [vmem:[%s5 + $0x4] sm:$0xf]
    %v137 = vld [vmem:[%s5 + $0x8] sm:$0xf]
    %v138 = vld [vmem:[%s5 + $0xc] sm:$0xf]
    %v139 = vld [vmem:[%s6] sm:$0x1]
    %v141 = vlaneseq
    %v142 = vshrl.u32 %v141, 7
    %v143 = vsub.s32 0, %v142
    %v144 = vrot.slane %v139, %v143
    %v150 = vunpack.c.l.b16 %v135
    %v151 = vunpack.c.l.b16 %v136
    %v152 = vunpack.c.l.b16 %v137
    %v153 = vunpack.c.l.b16 %v138
    %v154 = vpack.c.b16 %v151, %v150
    %v155 = vpack.c.b16 %v153, %v152
    %vm158 = vcmask 261120
    %v160 = vsel %vm158, %v134, 0
    %162 = vmatprep.subr.bf16.mxu0 0
    %163 = vmatpush1.bf16.msra.mxu0 0
    %164 = vmatprep.subr.bf16.mxu0 0
    %165 = vmatpush1.bf16.msra.mxu0 0
    %166 = vmatprep.subr.bf16.mxu0 0
    %167 = vmatpush1.bf16.msra.mxu0 0
    %168 = vmatprep.subr.bf16.mxu0 0
    %169 = vmatpush1.bf16.msra.mxu0 0
    %170 = vmatprep.subr.bf16.mxu0 0
    %171 = vmatpush1.bf16.msra.mxu0 0
    %172 = vmatprep.subr.bf16.mxu0 0
    %173 = vmatpush1.bf16.msra.mxu0 0
    %174 = vmatprep.subr.bf16.mxu0 0
    %175 = vmatpush1.bf16.msra.mxu0 %v155
    %176 = vmatprep.subr.bf16.mxu0 0
    %177 = vmatpush1.bf16.msra.mxu0 %v154
    %178 = vmatprep.subr.bf16.mxu0 0
    %179 = vmatpush2.bf16.msra.mxu0 0
    %180 = vmatprep.subr.bf16.mxu0 0
    %181 = vmatpush2.bf16.msra.mxu0 0
    %182 = vmatprep.subr.bf16.mxu0 0
    %183 = vmatpush2.bf16.msra.mxu0 0
    %184 = vmatprep.subr.bf16.mxu0 0
    %185 = vmatpush2.bf16.msra.mxu0 0
    %186 = vmatprep.subr.bf16.mxu0 0
    %187 = vmatpush2.bf16.msra.mxu0 0
    %188 = vmatprep.subr.bf16.mxu0 0
    %189 = vmatpush2.bf16.msra.mxu0 0
    %190 = vmatprep.subr.bf16.mxu0 0
    %191 = vmatpush2.bf16.msra.mxu0 0
    %192 = vmatprep.subr.bf16.mxu0 0
    %193 = vmatpush2.bf16.msra.mxu0 0
    %194 = vmatprep.mubr.bf16.mxu0 0
    %195 = vmatmul.mubr.bf16.gmra.mxu0 %v160
    %v196 = vpop.f32.mrf.mxu0
    %v197 = vadd.f32 %v144, %v196
    %v198 = vpop.f32.mrf.mxu0
    %v199 = vpop.f32.mrf.mxu0
    %v200 = vpop.f32.mrf.mxu0
    %201 = vdwg.mxu0
    %202 = vst [vmem:[#allocation3] sm:$0xff] %v197
    // Predicated region
    $region34: #{masklm_forward.1} parent=1 // pred_check
      _
    $region35: #{masklm_forward.1} parent=1 // pred_check_branch
      %204 = sbr.rel (0) target = $region37
    $region36: #{masklm_forward.1} parent=1 // pred_region
      %s206 = ssub.s32 128, 128
      %207 = vsyncadd [#allocation4], %s206
      %s209 = sshll.u32 [#allocation3], 4
      %s210 = int_to_ptr.vmem [resolvable:$true] %s209
      %212 = dma.vmem_to_hbm [thread:$0]  %s210, 128, %s7, [#allocation4]
    $region37: #{masklm_forward.1} parent=1 // pred_fallthru
      _
    // Predicated region
    $region38: #{masklm_forward.1} parent=1 // pred_check
      _
    $region39: #{masklm_forward.1} parent=1 // pred_check_branch
      %214 = sbr.rel (0) target = $region41
    $region40: #{masklm_forward.1} parent=1 // pred_region
      %215 = dma.done [#allocation4], 128
    $region41: #{masklm_forward.1} parent=1 // pred_fallthru
      _
    %216 = vsyncpa [#allocation4], 1

</llo_original>
